<compile_context>
chip_gen: v6e
topology: v6e:2x2x1
jax: 0.10.0
libtpu: 0.0.40
codegen_flags: <defaults>
</compile_context>

<pallas_src>
import functools
import math

import jax
import jax.numpy as jnp
from jax.experimental import pallas as pl
from jax.experimental.pallas import tpu as pltpu

_HALF_LOG_2PI = 0.5 * math.log(2.0 * math.pi)


def _round_up(n, m):
    return -(-n // m) * m


def _param_rows(S, H, A):
    """8-row-aligned row offsets of each sub-tensor in the packed buffer."""
    offsets = {}
    row = 0
    for name, rows in (("w1t", H), ("w2t", H), ("wht", 2 * A),
                       ("b1", H), ("b2", H), ("bh", 2 * A)):
        offsets[name] = row
        row += _round_up(rows, 8)
    return offsets, row


def _policy_kernel(xT_ref, epsT_ref, p_ref, outT_ref, *, S, H, A):
    off, _ = _param_rows(S, H, A)

    x = xT_ref[...]      # (S, TB)  batch in the lane dimension
    eps = epsT_ref[...]  # (A, TB)  standard-normal noise for rsample

    # Static, 8-row-aligned slices into the packed parameter buffer (views).
    w1t = p_ref[off["w1t"]:off["w1t"] + H, 0:S]        # (H, S)
    w2t = p_ref[off["w2t"]:off["w2t"] + H, 0:H]        # (H, H)
    wht = p_ref[off["wht"]:off["wht"] + 2 * A, 0:H]    # (2A, H) = [wb || wv]^T
    b1 = p_ref[off["b1"]:off["b1"] + H, 0:1]           # (H, 1)
    b2 = p_ref[off["b2"]:off["b2"] + H, 0:1]           # (H, 1)
    bh = p_ref[off["bh"]:off["bh"] + 2 * A, 0:1]       # (2A, 1) = [bb || bv]^T

    # dense1 + relu, dense2 + relu  (activations are (H, TB): lane-dense)
    h = jnp.maximum(jnp.dot(w1t, x, preferred_element_type=jnp.float32) + b1, 0.0)
    h = jnp.maximum(jnp.dot(w2t, h, preferred_element_type=jnp.float32) + b2, 0.0)

    # Fused heads: one matmul, same tanh on both heads.
    heads = jnp.tanh(jnp.dot(wht, h, preferred_element_type=jnp.float32) + bh)  # (2A, TB)
    loc = heads[0:A, :]                              # "bias" head (tanh applied)
    scale = heads[A:2 * A, :] * 0.5 + 0.5 + 1e-10    # "variance" head, used as std

    sampled = loc + scale * eps                      # Normal(loc, scale).rsample()
    # Normal(loc, scale).log_prob(sampled); since (sampled - loc)/scale == eps:
    log_prob = (-0.5) * (eps * eps) - jnp.log(scale) - _HALF_LOG_2PI

    # Direct sublane-slice stores: no lane concatenate, no cross-lane movement.
    outT_ref[0:A, :] = jnp.tanh(sampled)
    outT_ref[A:2 * A, :] = log_prob
    outT_ref[2 * A:3 * A, :] = jnp.tanh(loc)         # reference really does tanh(tanh(.))


def pack_policy_params(params):
    """Pack all 8 weight/bias tensors (transposed, 8-row aligned) into one buffer.

    Do this ONCE per parameter update; the packed buffer is reused by every
    policy_forward call so the kernel sees a single, grid-invariant operand.
    """
    w1, b1 = params["w1"], params["b1"]
    w2, b2 = params["w2"], params["b2"]
    wh = jnp.concatenate([params["wb"], params["wv"]], axis=1)   # (H, 2A)
    bh = jnp.concatenate([params["bb"], params["bv"]], axis=1)   # (1, 2A)
    S, H = w1.shape
    A = params["wb"].shape[1]
    C = max(S, H)
    off, P = _param_rows(S, H, A)

    buf = jnp.zeros((P, C), jnp.float32)
    for name, mat_t in (("w1t", w1.T), ("w2t", w2.T), ("wht", wh.T),
                        ("b1", b1.T), ("b2", b2.T), ("bh", bh.T)):
        r, c = mat_t.shape
        buf = buf.at[off[name]:off[name] + r, 0:c].set(mat_t.astype(jnp.float32))
    return buf, (S, H, A)


def policy_forward(state, eps, packed, dims, *, block_b=1024):
    """state: (B, S) f32, eps: (B, A) f32 noise, packed: pack_policy_params output."""
    S, H, A = dims
    B = state.shape[0]
    P, C = packed.shape

    # Tile selection: multiple of 128 lanes, >=2 parallel blocks whenever B
    # spans more than one 128-lane chunk (so v7x's 2nd TensorCore engages),
    # capped at block_b so the VMEM footprint never grows with B.
    block_b = max(128, (block_b // 128) * 128)
    n128 = _round_up(B, 128) // 128
    tb = 128 * max(1, min(block_b // 128, -(-n128 // 2)))
    Bp = _round_up(B, tb)
    grid = (Bp // tb,)

    # Feature-major layout: batch in the lane dimension (wrapper-side plumbing).
    state_t = jnp.pad(state.astype(jnp.float32), ((0, Bp - B), (0, 0))).T   # (S, Bp)
    eps_t = jnp.pad(eps.astype(jnp.float32), ((0, Bp - B), (0, 0))).T       # (A, Bp)

    kernel = functools.partial(_policy_kernel, S=S, H=H, A=A)
    out_t = pl.pallas_call(
        kernel,
        out_shape=jax.ShapeDtypeStruct((3 * A, Bp), jnp.float32),
        grid=grid,
        in_specs=[
            pl.BlockSpec((S, tb), lambda i: (0, i)),
            pl.BlockSpec((A, tb), lambda i: (0, i)),
            pl.BlockSpec((P, C), lambda i: (0, 0)),   # params: VMEM-resident, grid-invariant
        ],
        out_specs=pl.BlockSpec((3 * A, tb), lambda i: (0, i)),
        compiler_params=pltpu.CompilerParams(
            dimension_semantics=("parallel",),          # shard batch across TCs (v7x)
            vmem_limit_bytes=32 * 1024 * 1024,          # explicit budget, portable v5e/v6e/v7x
        ),
    )(state_t, eps_t, packed)

    out = out_t[:, 0:B].T            # drop batch padding, back to batch-major
    return out[:, 0:A], out[:, A:2 * A], out[:, 2 * A:3 * A]


def _xavier_uniform(key, fan_in, fan_out):
    # Same distribution as torch.nn.init.xavier_uniform_ (gain=1); stored as (in, out).
    bound = math.sqrt(6.0 / (fan_in + fan_out))
    return jax.random.uniform(key, (fan_in, fan_out), jnp.float32, -bound, bound)


def init_policy_params(key, state_size, action_size, hidden_size):
    k1, k2, k3, k4 = jax.random.split(key, 4)
    return {
        "w1": _xavier_uniform(k1, state_size, hidden_size),
        "b1": jnp.zeros((1, hidden_size), jnp.float32),
        "w2": _xavier_uniform(k2, hidden_size, hidden_size),
        "b2": jnp.zeros((1, hidden_size), jnp.float32),
        "wb": _xavier_uniform(k3, hidden_size, action_size),
        "bb": jnp.zeros((1, action_size), jnp.float32),
        "wv": _xavier_uniform(k4, hidden_size, action_size),
        "bv": jnp.zeros((1, action_size), jnp.float32),
    }


def policy_reference(state, eps, params):
    """Pure-JAX reference matching the PyTorch module, for correctness checks."""
    dot = functools.partial(jnp.dot, precision=jax.lax.Precision.HIGHEST)
    h = jnp.maximum(dot(state, params["w1"]) + params["b1"], 0.0)
    h = jnp.maximum(dot(h, params["w2"]) + params["b2"], 0.0)
    loc = jnp.tanh(dot(h, params["wb"]) + params["bb"])
    scale = jnp.tanh(dot(h, params["wv"]) + params["bv"]) / 2.0 + 0.5 + 1e-10
    action = jnp.tanh(loc)
    sampled = loc + scale * eps
    log_prob = (-((sampled - loc) ** 2) / (2.0 * scale * scale)
                - jnp.log(scale) - 0.5 * jnp.log(2.0 * jnp.pi))
    return jnp.tanh(sampled), log_prob, action


if __name__ == "__main__":
    STATE, ACTION, HIDDEN = 16, 4, 32

    key = jax.random.PRNGKey(0)
    k_params, k_data = jax.random.split(key)
    params = init_policy_params(k_params, STATE, ACTION, HIDDEN)
    packed, dims = pack_policy_params(params)   # packed once, reused per call

    # B=8   -> padded to one 128-lane block (grid=1).
    # B=256 -> two 128-lane blocks (grid=2, "parallel" -> both v7x TensorCores).
    for B in (8, 256):
        k_state, k_eps = jax.random.split(jax.random.fold_in(k_data, B))
        state = jax.random.normal(k_state, (B, STATE), jnp.float32)
        eps = jax.random.normal(k_eps, (B, ACTION), jnp.float32)

        outs = policy_forward(state, eps, packed, dims)
        jax.block_until_ready(outs)

        refs = policy_reference(state, eps, params)
        for got, ref in zip(outs, refs):
            assert got.shape == (B, ACTION)
            assert jnp.allclose(got, ref, atol=1e-3, rtol=1e-3), (
                "max abs err %.3e" % float(jnp.max(jnp.abs(got - ref))))

    print("KERNEL_OK")
</pallas_src>

<mosaic_0001>
module attributes {stable_mosaic.version = 11 : i64} {
  func.func @_policy_kernel(%arg0: i32, %arg1: memref<16x128xf32, #tpu.memory_space<vmem>>, %arg2: memref<4x128xf32, #tpu.memory_space<vmem>>, %arg3: memref<144x32xf32, #tpu.memory_space<vmem>>, %arg4: memref<12x128xf32, #tpu.memory_space<vmem>>) attributes {dimension_semantics = [#tpu.dimension_semantics<parallel>], iteration_bounds = array<i64: 1>, scalar_prefetch = 0 : i64, scratch_operands = 0 : i64, tpu.core_type = #tpu.core_type<tc>, window_params = [{transform_indices = @transform_0, window_bounds = array<i64: 16, 128>}, {transform_indices = @transform_1, window_bounds = array<i64: 4, 128>}, {pipeline_mode = #tpu.pipeline_mode<synchronous>, transform_indices = @transform_2, window_bounds = array<i64: 144, 32>}, {transform_indices = @transform_3, window_bounds = array<i64: 12, 128>}]} {
    %c0 = arith.constant 0 : index
    %c0_0 = arith.constant 0 : index
    %0 = vector.load %arg1[%c0, %c0_0] : memref<16x128xf32, #tpu.memory_space<vmem>>, vector<16x128xf32>
    %c0_1 = arith.constant 0 : index
    %c0_2 = arith.constant 0 : index
    %1 = vector.load %arg2[%c0_1, %c0_2] : memref<4x128xf32, #tpu.memory_space<vmem>>, vector<4x128xf32>
    %c0_3 = arith.constant 0 : index
    %c0_4 = arith.constant 0 : index
    %2 = vector.load %arg3[%c0_3, %c0_4] : memref<144x32xf32, #tpu.memory_space<vmem>>, vector<32x16xf32>
    %c32 = arith.constant 32 : index
    %c0_5 = arith.constant 0 : index
    %3 = vector.load %arg3[%c32, %c0_5] : memref<144x32xf32, #tpu.memory_space<vmem>>, vector<32x32xf32>
    %c64 = arith.constant 64 : index
    %c0_6 = arith.constant 0 : index
    %4 = vector.load %arg3[%c64, %c0_6] : memref<144x32xf32, #tpu.memory_space<vmem>>, vector<8x32xf32>
    %c72 = arith.constant 72 : index
    %c0_7 = arith.constant 0 : index
    %5 = vector.load %arg3[%c72, %c0_7] : memref<144x32xf32, #tpu.memory_space<vmem>>, vector<32x1xf32>
    %c104 = arith.constant 104 : index
    %c0_8 = arith.constant 0 : index
    %6 = vector.load %arg3[%c104, %c0_8] : memref<144x32xf32, #tpu.memory_space<vmem>>, vector<32x1xf32>
    %c136 = arith.constant 136 : index
    %c0_9 = arith.constant 0 : index
    %7 = vector.load %arg3[%c136, %c0_9] : memref<144x32xf32, #tpu.memory_space<vmem>>, vector<8x1xf32>
    %cst = arith.constant dense<0.000000e+00> : vector<32x128xf32>
    %8 = tpu.matmul %2, %0, %cst {dimension_numbers = #tpu.dot_dimension_numbers<[1], [0], [0], [1], [0, 0, 1, 1], [], []>} : vector<32x16xf32>, vector<16x128xf32>, vector<32x128xf32> -> vector<32x128xf32>
    %9 = vector.broadcast %5 : vector<32x1xf32> to vector<32x128xf32>
    %10 = arith.addf %8, %9 : vector<32x128xf32>
    %cst_10 = arith.constant 0.000000e+00 : f32
    %11 = vector.broadcast %cst_10 : f32 to vector<32x128xf32>
    %12 = arith.maximumf %10, %11 : vector<32x128xf32>
    %cst_11 = arith.constant dense<0.000000e+00> : vector<32x128xf32>
    %13 = tpu.matmul %3, %12, %cst_11 {dimension_numbers = #tpu.dot_dimension_numbers<[1], [0], [0], [1], [0, 0, 1, 1], [], []>} : vector<32x32xf32>, vector<32x128xf32>, vector<32x128xf32> -> vector<32x128xf32>
    %14 = vector.broadcast %6 : vector<32x1xf32> to vector<32x128xf32>
    %15 = arith.addf %13, %14 : vector<32x128xf32>
    %cst_12 = arith.constant 0.000000e+00 : f32
    %16 = vector.broadcast %cst_12 : f32 to vector<32x128xf32>
    %17 = arith.maximumf %15, %16 : vector<32x128xf32>
    %cst_13 = arith.constant dense<0.000000e+00> : vector<8x128xf32>
    %18 = tpu.matmul %4, %17, %cst_13 {dimension_numbers = #tpu.dot_dimension_numbers<[1], [0], [0], [1], [0, 0, 1, 1], [], []>} : vector<8x32xf32>, vector<32x128xf32>, vector<8x128xf32> -> vector<8x128xf32>
    %19 = vector.broadcast %7 : vector<8x1xf32> to vector<8x128xf32>
    %20 = arith.addf %18, %19 : vector<8x128xf32>
    %21 = math.tanh %20 : vector<8x128xf32>
    %22 = vector.extract_strided_slice %21 {offsets = [0, 0], sizes = [4, 128], strides = [1, 1]} : vector<8x128xf32> to vector<4x128xf32>
    %23 = vector.extract_strided_slice %21 {offsets = [4, 0], sizes = [4, 128], strides = [1, 1]} : vector<8x128xf32> to vector<4x128xf32>
    %cst_14 = arith.constant 5.000000e-01 : f32
    %24 = vector.broadcast %cst_14 : f32 to vector<4x128xf32>
    %25 = arith.mulf %23, %24 : vector<4x128xf32>
    %cst_15 = arith.constant 5.000000e-01 : f32
    %26 = vector.broadcast %cst_15 : f32 to vector<4x128xf32>
    %27 = arith.addf %25, %26 : vector<4x128xf32>
    %cst_16 = arith.constant 1.000000e-10 : f32
    %28 = vector.broadcast %cst_16 : f32 to vector<4x128xf32>
    %29 = arith.addf %27, %28 : vector<4x128xf32>
    %30 = arith.mulf %29, %1 : vector<4x128xf32>
    %31 = arith.addf %22, %30 : vector<4x128xf32>
    %32 = arith.mulf %1, %1 : vector<4x128xf32>
    %cst_17 = arith.constant -5.000000e-01 : f32
    %33 = vector.broadcast %cst_17 : f32 to vector<4x128xf32>
    %34 = arith.mulf %33, %32 : vector<4x128xf32>
    %35 = math.log %29 : vector<4x128xf32>
    %36 = arith.subf %34, %35 : vector<4x128xf32>
    %cst_18 = arith.constant 0.918938517 : f32
    %37 = vector.broadcast %cst_18 : f32 to vector<4x128xf32>
    %38 = arith.subf %36, %37 : vector<4x128xf32>
    %39 = math.tanh %31 : vector<4x128xf32>
    %c0_19 = arith.constant 0 : index
    %c0_20 = arith.constant 0 : index
    %40 = vector.load %arg4[%c0_19, %c0_20] : memref<12x128xf32, #tpu.memory_space<vmem>>, vector<4x128xf32>
    tpu.vector_store %arg4[%c0_19, %c0_20], %39 {strides = array<i32>} : memref<12x128xf32, #tpu.memory_space<vmem>>, vector<4x128xf32>,
    %c4 = arith.constant 4 : index
    %c0_21 = arith.constant 0 : index
    %41 = vector.load %arg4[%c4, %c0_21] : memref<12x128xf32, #tpu.memory_space<vmem>>, vector<4x128xf32>
    tpu.vector_store %arg4[%c4, %c0_21], %38 {strides = array<i32>} : memref<12x128xf32, #tpu.memory_space<vmem>>, vector<4x128xf32>,
    %42 = math.tanh %22 : vector<4x128xf32>
    %c8 = arith.constant 8 : index
    %c0_22 = arith.constant 0 : index
    %43 = vector.load %arg4[%c8, %c0_22] : memref<12x128xf32, #tpu.memory_space<vmem>>, vector<4x128xf32>
    tpu.vector_store %arg4[%c8, %c0_22], %42 {strides = array<i32>} : memref<12x128xf32, #tpu.memory_space<vmem>>, vector<4x128xf32>,
    return
  }
  func.func @transform_0(%arg0: i32) -> (i32, i32) {
    %c0_i32 = arith.constant 0 : i32
    %c0_i32_0 = arith.constant 0 : i32
    return %c0_i32, %arg0 : i32, i32
  }
  func.func @transform_1(%arg0: i32) -> (i32, i32) {
    %c0_i32 = arith.constant 0 : i32
    %c0_i32_0 = arith.constant 0 : i32
    return %c0_i32, %arg0 : i32, i32
  }
  func.func @transform_2(%arg0: i32) -> (i32, i32) {
    %c0_i32 = arith.constant 0 : i32
    %c0_i32_0 = arith.constant 0 : i32
    %c0_i32_1 = arith.constant 0 : i32
    return %c0_i32, %c0_i32_0 : i32, i32
  }
  func.func @transform_3(%arg0: i32) -> (i32, i32) {
    %c0_i32 = arith.constant 0 : i32
    %c0_i32_0 = arith.constant 0 : i32
    return %c0_i32, %arg0 : i32, i32
  }
}

</mosaic_0001>

<llo_original>
// kernel: tpu_custom_call.1
$region0: #{tpu_custom_call.1}
  #allocation0 [shape = 'u32[]', space=smem, size = 0x4, offset = 0x4, fixed_abs, tag = 'smem constant byte address 0x4 - core index']
  #allocation1 [shape = 'u32[144,128]{1,0:T(1,128)}', space=vmem, size = 0x12000, scoped, tag = 'internal scratch']
  %s0 = inlined_call_operand.vmem [shape: f32[16,128], index: 0, kind: input, shape index: {}]
  %s1 = inlined_call_operand.vmem [shape: f32[4,128], index: 1, kind: input, shape index: {}]
  %s2 = inlined_call_operand.vmem [shape: f32[144,32], index: 2, kind: input, shape index: {}]
  %s3 = inlined_call_operand.hbm [shape: f32[12,128], index: 3, kind: output, shape index: {}]
  %s4 = sld [smem:[#allocation0]]
  $region22: #{tpu_custom_call.1} parent=0
    _
  %s6 = ssub.s32 1, %s4
  %s7 = scalar_select 0, %s6, %s4
  $region1: #{tpu_custom_call.1} parent=0
    #allocation2 [shape = 'u8[8192]{0}', space=vmem, size = 0x2000, scoped, tag = 'output window, operand 0, single buffered']
    #allocation3 [shape = 's32[1]{0}', space=sflag, size = 0x4, scoped, tag = 'scoped memory for tpu_custom_call.1']
    %8 = vsyncpa [#allocation3], 0
    // Predicated region
    $region2: #{tpu_custom_call.1} parent=1 // pred_check
      _
    $region3: #{tpu_custom_call.1} parent=1 // pred_check_branch
      %10 = sbr.rel (0) target = $region5
    $region4: #{tpu_custom_call.1} parent=1 // pred_region
      _
    $region5: #{tpu_custom_call.1} parent=1 // pred_fallthru
      _
    // Predicated region
    $region6: #{tpu_custom_call.1} parent=1 // pred_check
      _
    $region7: #{tpu_custom_call.1} parent=1 // pred_check_branch
      %12 = sbr.rel (0) target = $region9
    $region8: #{tpu_custom_call.1} parent=1 // pred_region
      _
    $region9: #{tpu_custom_call.1} parent=1 // pred_fallthru
      _
    // Predicated region
    $region10: #{tpu_custom_call.1} parent=1 // pred_check
      _
    $region11: #{tpu_custom_call.1} parent=1 // pred_check_branch
      %14 = sbr.rel (0) target = $region13
    $region12: #{tpu_custom_call.1} parent=1 // pred_region
      _
    $region13: #{tpu_custom_call.1} parent=1 // pred_fallthru
      _
    %v15 = vld [vmem:[%s0] sm:$0xff]
    %v16 = vld [vmem:[%s0 + $0x8] sm:$0xff]
    %v17 = vld [vmem:[%s1] sm:$0xf]
    %v18 = vld [vmem:[%s2] sm:$0xff]
    %v19 = vld [vmem:[%s2 + $0x8] sm:$0xff]
    %v20 = vld [vmem:[%s2 + $0x10] sm:$0xff]
    %v21 = vld [vmem:[%s2 + $0x18] sm:$0xff]
    %v22 = vld [vmem:[%s2 + $0x20] sm:$0xff]
    %v23 = vld [vmem:[%s2 + $0x28] sm:$0xff]
    %v24 = vld [vmem:[%s2 + $0x30] sm:$0xff]
    %v25 = vld [vmem:[%s2 + $0x38] sm:$0xff]
    %v26 = vld [vmem:[%s2 + $0x40] sm:$0xff]
    %v27 = vld [vmem:[%s2 + $0x48] sm:$0xff]
    %v28 = vld [vmem:[%s2 + $0x50] sm:$0xff]
    %v29 = vld [vmem:[%s2 + $0x58] sm:$0xff]
    %v30 = vld [vmem:[%s2 + $0x60] sm:$0xff]
    %v31 = vld [vmem:[%s2 + $0x68] sm:$0xff]
    %v32 = vld [vmem:[%s2 + $0x70] sm:$0xff]
    %v33 = vld [vmem:[%s2 + $0x78] sm:$0xff]
    %v34 = vld [vmem:[%s2 + $0x80] sm:$0xff]
    %v35 = vld [vmem:[%s2 + $0x88] sm:$0xff]
    %37 = vset.pattern.permute.xlu0 0
    %38 = vperm.xlu0 %37, %v27
    %v39 = vpop.permute.xlu0 %38
    %42 = vset.pattern.permute.xlu0 0
    %43 = vperm.xlu0 %42, %v28
    %v44 = vpop.permute.xlu0 %43
    %47 = vset.pattern.permute.xlu0 0
    %48 = vperm.xlu0 %47, %v29
    %v49 = vpop.permute.xlu0 %48
    %52 = vset.pattern.permute.xlu0 0
    %53 = vperm.xlu0 %52, %v30
    %v54 = vpop.permute.xlu0 %53
    %vm56 = vcmask 130048
    %v58 = vsel %vm56, %v18, 0
    %v61 = vsel %vm56, %v19, 0
    %v64 = vsel %vm56, %v20, 0
    %v67 = vsel %vm56, %v21, 0
    %69 = vmatprep.subr.mxu0 0.0
    %70 = vmatpush1.msra.mxu0 0.0
    %71 = vmatprep.subr.mxu0 0.0
    %72 = vmatpush1.msra.mxu0 0.0
    %73 = vmatprep.subr.mxu0 0.0
    %74 = vmatpush1.msra.mxu0 0.0
    %75 = vmatprep.subr.mxu0 0.0
    %76 = vmatpush1.msra.mxu0 0.0
    %77 = vmatprep.subr.mxu0 0.0
    %78 = vmatpush1.msra.mxu0 0.0
    %79 = vmatprep.subr.mxu0 0.0
    %80 = vmatpush1.msra.mxu0 0.0
    %81 = vmatprep.subr.mxu0 0.0
    %82 = vmatpush1.msra.mxu0 0.0
    %83 = vmatprep.subr.mxu0 0.0
    %84 = vmatpush1.msra.mxu0 0.0
    %85 = vmatprep.subr.mxu0 0.0
    %86 = vmatpush1.msra.mxu0 0.0
    %87 = vmatprep.subr.mxu0 0.0
    %88 = vmatpush1.msra.mxu0 0.0
    %89 = vmatprep.subr.mxu0 0.0
    %90 = vmatpush1.msra.mxu0 0.0
    %91 = vmatprep.subr.mxu0 0.0
    %92 = vmatpush1.msra.mxu0 0.0
    %93 = vmatprep.subr.mxu0 0.0
    %94 = vmatpush1.msra.mxu0 0.0
    %95 = vmatprep.subr.mxu0 0.0
    %96 = vmatpush1.msra.mxu0 0.0
    %97 = vmatprep.subr.mxu0 0.0
    %98 = vmatpush1.msra.mxu0 %v16
    %99 = vmatprep.subr.mxu0 0.0
    %100 = vmatpush1.msra.mxu0 %v15
    %101 = vmatprep.subr.mxu0 0.0
    %102 = vmatpush2.msra.mxu0 0.0
    %103 = vmatprep.subr.mxu0 0.0
    %104 = vmatpush2.msra.mxu0 0.0
    %105 = vmatprep.subr.mxu0 0.0
    %106 = vmatpush2.msra.mxu0 0.0
    %107 = vmatprep.subr.mxu0 0.0
    %108 = vmatpush2.msra.mxu0 0.0
    %109 = vmatprep.subr.mxu0 0.0
    %110 = vmatpush2.msra.mxu0 0.0
    %111 = vmatprep.subr.mxu0 0.0
    %112 = vmatpush2.msra.mxu0 0.0
    %113 = vmatprep.subr.mxu0 0.0
    %114 = vmatpush2.msra.mxu0 0.0
    %115 = vmatprep.subr.mxu0 0.0
    %116 = vmatpush2.msra.mxu0 0.0
    %117 = vmatprep.subr.mxu0 0.0
    %118 = vmatpush2.msra.mxu0 0.0
    %119 = vmatprep.subr.mxu0 0.0
    %120 = vmatpush2.msra.mxu0 0.0
    %121 = vmatprep.subr.mxu0 0.0
    %122 = vmatpush2.msra.mxu0 0.0
    %123 = vmatprep.subr.mxu0 0.0
    %124 = vmatpush2.msra.mxu0 0.0
    %125 = vmatprep.subr.mxu0 0.0
    %126 = vmatpush2.msra.mxu0 0.0
    %127 = vmatprep.subr.mxu0 0.0
    %128 = vmatpush2.msra.mxu0 0.0
    %129 = vmatprep.subr.mxu0 0.0
    %130 = vmatpush2.msra.mxu0 0.0
    %131 = vmatprep.subr.mxu0 0.0
    %132 = vmatpush2.msra.mxu0 0.0
    %133 = vmatprep.mubr.f32.mxu0 0.0
    %134 = vmatmul.mubr.f32.gmra.mxu0 %v58
    %v135 = vpop.f32.mrf.mxu0
    %v136 = vadd.f32 %v39, %v135
    %v137 = vpop.f32.mrf.mxu0
    %138 = vmatprep.mubr.f32.mxu0 0.0
    %139 = vmatmul.mubr.f32.gmra.mxu0 %v61
    %v140 = vpop.f32.mrf.mxu0
    %v141 = vadd.f32 %v44, %v140
    %v142 = vpop.f32.mrf.mxu0
    %143 = vmatprep.mubr.f32.mxu0 0.0
    %144 = vmatmul.mubr.f32.gmra.mxu0 %v64
    %v145 = vpop.f32.mrf.mxu0
    %v146 = vadd.f32 %v49, %v145
    %v147 = vpop.f32.mrf.mxu0
    %148 = vmatprep.mubr.f32.mxu0 0.0
    %149 = vmatmul.mubr.f32.gmra.mxu0 %v67
    %v150 = vpop.f32.mrf.mxu0
    %v151 = vadd.f32 %v54, %v150
    %v152 = vpop.f32.mrf.mxu0
    %153 = vdwg.mxu0
    %v154 = vmax.f32 %v136, 0.0
    %v155 = vmax.f32 %v141, 0.0
    %v156 = vmax.f32 %v146, 0.0
    %v157 = vmax.f32 %v151, 0.0
    %159 = vset.pattern.permute.xlu0 0
    %160 = vperm.xlu0 %159, %v31
    %v161 = vpop.permute.xlu0 %160
    %164 = vset.pattern.permute.xlu0 0
    %165 = vperm.xlu0 %164, %v32
    %v166 = vpop.permute.xlu0 %165
    %169 = vset.pattern.permute.xlu0 0
    %170 = vperm.xlu0 %169, %v33
    %v171 = vpop.permute.xlu0 %170
    %174 = vset.pattern.permute.xlu0 0
    %175 = vperm.xlu0 %174, %v34
    %v176 = vpop.permute.xlu0 %175
    %vm178 = vcmask 261120
    %v180 = vsel %vm178, %v22, 0
    %v183 = vsel %vm178, %v23, 0
    %v186 = vsel %vm178, %v24, 0
    %v189 = vsel %vm178, %v25, 0
    %191 = vmatprep.subr.mxu0 0.0
    %192 = vmatpush1.msra.mxu0 0.0
    %193 = vmatprep.subr.mxu0 0.0
    %194 = vmatpush1.msra.mxu0 0.0
    %195 = vmatprep.subr.mxu0 0.0
    %196 = vmatpush1.msra.mxu0 0.0
    %197 = vmatprep.subr.mxu0 0.0
    %198 = vmatpush1.msra.mxu0 0.0
    %199 = vmatprep.subr.mxu0 0.0
    %200 = vmatpush1.msra.mxu0 0.0
    %201 = vmatprep.subr.mxu0 0.0
    %202 = vmatpush1.msra.mxu0 0.0
    %203 = vmatprep.subr.mxu0 0.0
    %204 = vmatpush1.msra.mxu0 0.0
    %205 = vmatprep.subr.mxu0 0.0
    %206 = vmatpush1.msra.mxu0 0.0
    %207 = vmatprep.subr.mxu0 0.0
    %208 = vmatpush1.msra.mxu0 0.0
    %209 = vmatprep.subr.mxu0 0.0
    %210 = vmatpush1.msra.mxu0 0.0
    %211 = vmatprep.subr.mxu0 0.0
    %212 = vmatpush1.msra.mxu0 0.0
    %213 = vmatprep.subr.mxu0 0.0
    %214 = vmatpush1.msra.mxu0 0.0
    %215 = vmatprep.subr.mxu0 0.0
    %216 = vmatpush1.msra.mxu0 %v157
    %217 = vmatprep.subr.mxu0 0.0
    %218 = vmatpush1.msra.mxu0 %v156
    %219 = vmatprep.subr.mxu0 0.0
    %220 = vmatpush1.msra.mxu0 %v155
    %221 = vmatprep.subr.mxu0 0.0
    %222 = vmatpush1.msra.mxu0 %v154
    %223 = vmatprep.subr.mxu0 0.0
    %224 = vmatpush2.msra.mxu0 0.0
    %225 = vmatprep.subr.mxu0 0.0
    %226 = vmatpush2.msra.mxu0 0.0
    %227 = vmatprep.subr.mxu0 0.0
    %228 = vmatpush2.msra.mxu0 0.0
    %229 = vmatprep.subr.mxu0 0.0
    %230 = vmatpush2.msra.mxu0 0.0
    %231 = vmatprep.subr.mxu0 0.0
    %232 = vmatpush2.msra.mxu0 0.0
    %233 = vmatprep.subr.mxu0 0.0
    %234 = vmatpush2.msra.mxu0 0.0
    %235 = vmatprep.subr.mxu0 0.0
    %236 = vmatpush2.msra.mxu0 0.0
    %237 = vmatprep.subr.mxu0 0.0
    %238 = vmatpush2.msra.mxu0 0.0
    %239 = vmatprep.subr.mxu0 0.0
    %240 = vmatpush2.msra.mxu0 0.0
    %241 = vmatprep.subr.mxu0 0.0
    %242 = vmatpush2.msra.mxu0 0.0
    %243 = vmatprep.subr.mxu0 0.0
    %244 = vmatpush2.msra.mxu0 0.0
    %245 = vmatprep.subr.mxu0 0.0
    %246 = vmatpush2.msra.mxu0 0.0
    %247 = vmatprep.subr.mxu0 0.0
    %248 = vmatpush2.msra.mxu0 0.0
    %249 = vmatprep.subr.mxu0 0.0
    %250 = vmatpush2.msra.mxu0 0.0
    %251 = vmatprep.subr.mxu0 0.0
    %252 = vmatpush2.msra.mxu0 0.0
    %253 = vmatprep.subr.mxu0 0.0
    %254 = vmatpush2.msra.mxu0 0.0
    %255 = vmatprep.mubr.f32.mxu0 0.0
    %256 = vmatmul.mubr.f32.gmra.mxu0 %v180
    %v257 = vpop.f32.mrf.mxu0
    %v258 = vadd.f32 %v161, %v257
    %v259 = vpop.f32.mrf.mxu0
    %260 = vmatprep.mubr.f32.mxu0 0.0
    %261 = vmatmul.mubr.f32.gmra.mxu0 %v183
    %v262 = vpop.f32.mrf.mxu0
    %v263 = vadd.f32 %v166, %v262
    %v264 = vpop.f32.mrf.mxu0
    %265 = vmatprep.mubr.f32.mxu0 0.0
    %266 = vmatmul.mubr.f32.gmra.mxu0 %v186
    %v267 = vpop.f32.mrf.mxu0
    %v268 = vadd.f32 %v171, %v267
    %v269 = vpop.f32.mrf.mxu0
    %270 = vmatprep.mubr.f32.mxu0 0.0
    %271 = vmatmul.mubr.f32.gmra.mxu0 %v189
    %v272 = vpop.f32.mrf.mxu0
    %v273 = vadd.f32 %v176, %v272
    %v274 = vpop.f32.mrf.mxu0
    %275 = vdwg.mxu0
    %v276 = vmax.f32 %v258, 0.0
    %v277 = vmax.f32 %v263, 0.0
    %v278 = vmax.f32 %v268, 0.0
    %v279 = vmax.f32 %v273, 0.0
    %281 = vset.pattern.permute.xlu0 0
    %282 = vperm.xlu0 %281, %v35
    %v283 = vpop.permute.xlu0 %282
    %v286 = vsel %vm178, %v26, 0
    %288 = vmatprep.subr.mxu0 0.0
    %289 = vmatpush1.msra.mxu0 0.0
    %290 = vmatprep.subr.mxu0 0.0
    %291 = vmatpush1.msra.mxu0 0.0
    %292 = vmatprep.subr.mxu0 0.0
    %293 = vmatpush1.msra.mxu0 0.0
    %294 = vmatprep.subr.mxu0 0.0
    %295 = vmatpush1.msra.mxu0 0.0
    %296 = vmatprep.subr.mxu0 0.0
    %297 = vmatpush1.msra.mxu0 0.0
    %298 = vmatprep.subr.mxu0 0.0
    %299 = vmatpush1.msra.mxu0 0.0
    %300 = vmatprep.subr.mxu0 0.0
    %301 = vmatpush1.msra.mxu0 0.0
    %302 = vmatprep.subr.mxu0 0.0
    %303 = vmatpush1.msra.mxu0 0.0
    %304 = vmatprep.subr.mxu0 0.0
    %305 = vmatpush1.msra.mxu0 0.0
    %306 = vmatprep.subr.mxu0 0.0
    %307 = vmatpush1.msra.mxu0 0.0
    %308 = vmatprep.subr.mxu0 0.0
    %309 = vmatpush1.msra.mxu0 0.0
    %310 = vmatprep.subr.mxu0 0.0
    %311 = vmatpush1.msra.mxu0 0.0
    %312 = vmatprep.subr.mxu0 0.0
    %313 = vmatpush1.msra.mxu0 %v279
    %314 = vmatprep.subr.mxu0 0.0
    %315 = vmatpush1.msra.mxu0 %v278
    %316 = vmatprep.subr.mxu0 0.0
    %317 = vmatpush1.msra.mxu0 %v277
    %318 = vmatprep.subr.mxu0 0.0
    %319 = vmatpush1.msra.mxu0 %v276
    %320 = vmatprep.subr.mxu0 0.0
    %321 = vmatpush2.msra.mxu0 0.0
    %322 = vmatprep.subr.mxu0 0.0
    %323 = vmatpush2.msra.mxu0 0.0
    %324 = vmatprep.subr.mxu0 0.0
    %325 = vmatpush2.msra.mxu0 0.0
    %326 = vmatprep.subr.mxu0 0.0
    %327 = vmatpush2.msra.mxu0 0.0
    %328 = vmatprep.subr.mxu0 0.0
    %329 = vmatpush2.msra.mxu0 0.0
    %330 = vmatprep.subr.mxu0 0.0
    %331 = vmatpush2.msra.mxu0 0.0
    %332 = vmatprep.subr.mxu0 0.0
    %333 = vmatpush2.msra.mxu0 0.0
    %334 = vmatprep.subr.mxu0 0.0
    %335 = vmatpush2.msra.mxu0 0.0
    %336 = vmatprep.subr.mxu0 0.0
    %337 = vmatpush2.msra.mxu0 0.0
    %338 = vmatprep.subr.mxu0 0.0
    %339 = vmatpush2.msra.mxu0 0.0
    %340 = vmatprep.subr.mxu0 0.0
    %341 = vmatpush2.msra.mxu0 0.0
    %342 = vmatprep.subr.mxu0 0.0
    %343 = vmatpush2.msra.mxu0 0.0
    %344 = vmatprep.subr.mxu0 0.0
    %345 = vmatpush2.msra.mxu0 0.0
    %346 = vmatprep.subr.mxu0 0.0
    %347 = vmatpush2.msra.mxu0 0.0
    %348 = vmatprep.subr.mxu0 0.0
    %349 = vmatpush2.msra.mxu0 0.0
    %350 = vmatprep.subr.mxu0 0.0
    %351 = vmatpush2.msra.mxu0 0.0
    %352 = vmatprep.mubr.f32.mxu0 0.0
    %353 = vmatmul.mubr.f32.gmra.mxu0 %v286
    %v354 = vpop.f32.mrf.mxu0
    %v355 = vadd.f32 %v283, %v354
    %v356 = vpop.f32.mrf.mxu0
    %357 = vdwg.mxu0
    %v358 = vtanh.pop %v355
    %v359 = vmul.f32 %v358, 0.5
    %v360 = vadd.f32 %v359, 0.5
    %v361 = vadd.f32 %v360, 1e-10
    %v363 = vrot.slane %v17, 4
    %v365 = vmul.f32 %v361, %v363
    %v367 = vrot.slane %v365, 4
    %v369 = vadd.f32 %v358, %v367
    %v370 = vmul.f32 %v17, %v17
    %v371 = vmul.f32 %v370, -0.5
    %v372 = vlog2.pop %v361
    %v373 = vmul.f32 %v372, 0.6931472
    %v375 = vrot.slane %v373, 4
    %v377 = vsub.f32 %v371, %v375
    %v378 = vsub.f32 %v377, 0.9189385
    %v379 = vtanh.pop %v369
    %380 = vst [vmem:[#allocation2] sm:$0xf] %v379
    %381 = vst [vmem:[#allocation2 + $0x4] sm:$0xf] %v378
    %v382 = vtanh.pop %v358
    %383 = vst [vmem:[#allocation2 + $0x8] sm:$0xf] %v382
    // Predicated region
    $region14: #{tpu_custom_call.1} parent=1 // pred_check
      _
    $region15: #{tpu_custom_call.1} parent=1 // pred_check_branch
      %385 = sbr.rel (0) target = $region17
    $region16: #{tpu_custom_call.1} parent=1 // pred_region
      %s387 = ssub.s32 256, 256
      %388 = vsyncadd [#allocation3], %s387
      %s389 = sshll.u32 [#allocation2], 4
      %s390 = int_to_ptr.vmem [resolvable:$true] %s389
      %395 = dma.vmem_to_hbm [thread:$0]  %s390, 256, %s3, [#allocation3], 128, 128, 8
    $region17: #{tpu_custom_call.1} parent=1 // pred_fallthru
      _
    // Predicated region
    $region18: #{tpu_custom_call.1} parent=1 // pred_check
      _
    $region19: #{tpu_custom_call.1} parent=1 // pred_check_branch
      %397 = sbr.rel (0) target = $region21
    $region20: #{tpu_custom_call.1} parent=1 // pred_region
      %398 = dma.done [#allocation3], 256
    $region21: #{tpu_custom_call.1} parent=1 // pred_fallthru
      _
    %399 = vsyncpa [#allocation3], 1

</llo_original>
